<compile_context>
chip_gen: v7x
topology: tpu7x:2x2x1
jax: 0.10.0
libtpu: 0.0.40
codegen_flags: <defaults>
</compile_context>

<pallas_src>
import functools

import jax
import jax.numpy as jnp
from jax.experimental import pallas as pl
from jax.experimental.pallas import tpu as pltpu

LANE = 128          # lane width: (n, m) -> (n, m//LANE, LANE) reshape is free
CHUNK_ROWS = 512    # rows per inner accumulation chunk (bounds VMEM temps)


def _cdiv(a, b):
    return -(-a // b)


def _round_up(a, b):
    return _cdiv(a, b) * b


def _dice_sums_kernel(pred_ref, tgt_ref, a_out, b_out, c_out, *,
                      tr, lane, sub, chunk_rows, r_valid, need_row_mask,
                      binary_target):
    """One (sample, M-block): partial sums of p*t, p*p, t*t folded to (sub, lane)."""
    k = pl.program_id(1)
    nchunks = tr // chunk_rows

    def fold(v):
        if chunk_rows == sub:
            return v
        # (chunk_rows, lane) -> (chunk_rows//sub, sub, lane) -> (sub, lane):
        # pure vreg-wise VPU adds, no cross-sublane XLU reduce per tile.
        return jnp.sum(v.reshape(chunk_rows // sub, sub, lane), axis=0)

    def chunk(c, carry):
        a_acc, b_acc, c_acc = carry
        row0 = c * chunk_rows
        if not isinstance(row0, int):
            row0 = pl.multiple_of(row0, chunk_rows)
        x = pred_ref[0, pl.ds(row0, chunk_rows), :].astype(jnp.float32)
        t = tgt_ref[0, pl.ds(row0, chunk_rows), :].astype(jnp.float32)
        p = jax.nn.sigmoid(x)                      # EUP; hidden under HBM
        if need_row_mask:
            # Only the last M-block can contain rows past the valid extent;
            # out-of-bounds rows hold unspecified data -> zero them out.
            row = jax.lax.broadcasted_iota(jnp.int32, (chunk_rows, lane), 0)
            valid = (k * tr + row0 + row) < r_valid
            p = jnp.where(valid, p, 0.0)
            t = jnp.where(valid, t, 0.0)
        tt = t if binary_target else t * t         # t in {0,1} -> t*t == t
        return (a_acc + fold(p * t), b_acc + fold(p * p), c_acc + fold(tt))

    zero = jnp.zeros((sub, lane), jnp.float32)
    if nchunks == 1:
        a_acc, b_acc, c_acc = chunk(0, (zero, zero, zero))
    else:
        a_acc, b_acc, c_acc = jax.lax.fori_loop(
            0, nchunks, chunk, (zero, zero, zero))

    a_out[0, 0] = a_acc
    b_out[0, 0] = b_acc
    c_out[0, 0] = c_acc


def dice_loss_pallas(pred, target, weight=None, *, eps=1e-3, loss_weight=1.0,
                     reduction="mean", avg_factor=None, binary_target=False,
                     max_block_rows=16384):
    """DiceLoss.forward(pred, target) — sigmoid activation, V-Net dice.

    Defaults reproduce DiceLoss(use_sigmoid=True, activate=True,
    reduction='mean', naive_dice=False, loss_weight=1.0, eps=1e-3).
    Set binary_target=True only for 0/1 masks (elides the t*t multiply).
    """
    n = pred.shape[0]
    pred2 = pred.reshape(n, -1)        # native dtype, free reshape
    tgt2 = target.reshape(n, -1)       # native dtype, free reshape
    m = pred2.shape[1]

    lane = LANE
    m_pad = _round_up(m, lane)
    if m_pad != m:
        # TODO(synk): rare fallback copy (only when the flattened sample size
        # isn't a multiple of 128).  pred padded with a large-negative logit
        # (sigmoid == 0 exactly), target with 0 -> padding contributes nothing.
        pred2 = jnp.pad(pred2, ((0, 0), (0, m_pad - m)), constant_values=-1e4)
        tgt2 = jnp.pad(tgt2, ((0, 0), (0, m_pad - m)), constant_values=0)

    r = m_pad // lane                   # rows of `lane` elements per sample
    if r >= CHUNK_ROWS:
        tr = min(_round_up(max_block_rows, CHUNK_ROWS),
                 (r // CHUNK_ROWS) * CHUNK_ROWS)
        sub, chunk_rows = 8, CHUNK_ROWS
    elif r >= 8:
        tr = (r // 8) * 8
        sub, chunk_rows = 8, tr
    else:
        tr = r                          # full-extent block (tiny inputs)
        sub, chunk_rows = r, r
    grid_k = _cdiv(r, tr)
    need_row_mask = (grid_k * tr != r)

    pred3 = pred2.reshape(n, r, lane)
    tgt3 = tgt2.reshape(n, r, lane)

    kernel = functools.partial(
        _dice_sums_kernel, tr=tr, lane=lane, sub=sub, chunk_rows=chunk_rows,
        r_valid=r, need_row_mask=need_row_mask, binary_target=binary_target)

    # Explicit VMEM budget: double-buffered input blocks + tiny output blocks.
    blk_elems = tr * lane
    need = 2 * (blk_elems * pred3.dtype.itemsize
                + blk_elems * tgt3.dtype.itemsize
                + 3 * sub * lane * 4)
    vmem_limit = int(min(max(need + (6 << 20), 16 << 20), 60 << 20))

    out_shape = tuple(jax.ShapeDtypeStruct((n, grid_k, sub, lane), jnp.float32)
                      for _ in range(3))
    out_block = pl.BlockSpec((1, 1, sub, lane), lambda i, k: (i, k, 0, 0))

    a_s, b_s, c_s = pl.pallas_call(
        kernel,
        out_shape=out_shape,
        grid_spec=pltpu.PrefetchScalarGridSpec(
            num_scalar_prefetch=0,
            grid=(n, grid_k),
            in_specs=[
                pl.BlockSpec((1, tr, lane), lambda i, k: (i, k, 0)),
                pl.BlockSpec((1, tr, lane), lambda i, k: (i, k, 0)),
            ],
            out_specs=[out_block, out_block, out_block],
        ),
        compiler_params=pltpu.CompilerParams(
            dimension_semantics=("parallel", "parallel"),
            vmem_limit_bytes=vmem_limit),
    )(pred3, tgt3)

    # Tiny epilogue on (N, K, 8, 128) arrays: fold, dice combine, reduction.
    a = jnp.sum(a_s, axis=(1, 2, 3))
    b = jnp.sum(b_s, axis=(1, 2, 3)) + eps
    c = jnp.sum(c_s, axis=(1, 2, 3)) + eps
    loss = 1.0 - 2.0 * a / (b + c)                 # (N,) per-sample loss

    if weight is not None:
        loss = loss * weight
    if avg_factor is None:
        if reduction == "mean":
            loss = jnp.mean(loss)
        elif reduction == "sum":
            loss = jnp.sum(loss)
        elif reduction != "none":
            raise ValueError(f"bad reduction {reduction!r}")
    elif reduction == "mean":
        loss = jnp.sum(loss) / (avg_factor + jnp.finfo(jnp.float32).eps)
    elif reduction != "none":
        raise ValueError('avg_factor can not be used with reduction="sum"')

    return loss_weight * loss


def _dice_loss_ref(pred_nchw, target_nchw, eps=1e-3, loss_weight=1.0):
    n = pred_nchw.shape[0]
    p = jax.nn.sigmoid(pred_nchw.reshape(n, -1).astype(jnp.float32))
    t = target_nchw.reshape(n, -1).astype(jnp.float32)
    a = jnp.sum(p * t, axis=1)
    b = jnp.sum(p * p, axis=1) + eps
    c = jnp.sum(t * t, axis=1) + eps
    loss = 1.0 - 2.0 * a / (b + c)
    return loss_weight * jnp.mean(loss)


if __name__ == "__main__":
    key = jax.random.PRNGKey(0)
    k1, k2 = jax.random.split(key)
    # pred logits (N, C, H, W); target binary masks, same shape.
    pred = jax.random.normal(k1, (2, 4, 16, 16), dtype=jnp.float32)
    target = (jax.random.uniform(k2, (2, 4, 16, 16)) > 0.5).astype(jnp.float32)

    loss = dice_loss_pallas(pred, target)
    loss = jax.block_until_ready(loss)

    ref = _dice_loss_ref(pred, target)
    assert jnp.allclose(loss, ref, atol=1e-5, rtol=1e-5), (loss, ref)
    print("KERNEL_OK")
</pallas_src>

<mosaic_0001>
module attributes {stable_mosaic.version = 11 : i64} {
  func.func @_dice_sums_kernel(%arg0: i32, %arg1: i32, %arg2: memref<1x8x128xf32, #tpu.memory_space<vmem>>, %arg3: memref<1x8x128xf32, #tpu.memory_space<vmem>>, %arg4: memref<1x1x8x128xf32, #tpu.memory_space<vmem>>, %arg5: memref<1x1x8x128xf32, #tpu.memory_space<vmem>>, %arg6: memref<1x1x8x128xf32, #tpu.memory_space<vmem>>) attributes {dimension_semantics = [#tpu.dimension_semantics<parallel>, #tpu.dimension_semantics<parallel>], iteration_bounds = array<i64: 2, 1>, scalar_prefetch = 0 : i64, scratch_operands = 0 : i64, tpu.core_type = #tpu.core_type<tc>, window_params = [{transform_indices = @transform_0, window_bounds = array<i64: 1, 8, 128>}, {transform_indices = @transform_1, window_bounds = array<i64: 1, 8, 128>}, {transform_indices = @transform_2, window_bounds = array<i64: 1, 1, 8, 128>}, {transform_indices = @transform_3, window_bounds = array<i64: 1, 1, 8, 128>}, {transform_indices = @transform_4, window_bounds = array<i64: 1, 1, 8, 128>}]} {
    %cst = arith.constant 0.000000e+00 : f32
    %0 = vector.broadcast %cst : f32 to vector<8x128xf32>
    %c0 = arith.constant 0 : index
    %c0_0 = arith.constant 0 : index
    %c0_1 = arith.constant 0 : index
    %1 = vector.load %arg2[%c0, %c0_0, %c0_1] : memref<1x8x128xf32, #tpu.memory_space<vmem>>, vector<1x8x128xf32>
    %2 = vector.shape_cast %1 : vector<1x8x128xf32> to vector<8x128xf32>
    %c0_2 = arith.constant 0 : index
    %c0_3 = arith.constant 0 : index
    %c0_4 = arith.constant 0 : index
    %3 = vector.load %arg3[%c0_2, %c0_3, %c0_4] : memref<1x8x128xf32, #tpu.memory_space<vmem>>, vector<1x8x128xf32>
    %4 = vector.shape_cast %3 : vector<1x8x128xf32> to vector<8x128xf32>
    %5 = arith.negf %2 : vector<8x128xf32>
    %6 = math.exp %5 : vector<8x128xf32>
    %cst_5 = arith.constant 1.000000e+00 : f32
    %7 = vector.broadcast %cst_5 : f32 to vector<8x128xf32>
    %8 = arith.addf %7, %6 : vector<8x128xf32>
    %9 = arith.divf %7, %8 : vector<8x128xf32>
    %10 = arith.mulf %4, %4 : vector<8x128xf32>
    %11 = arith.mulf %9, %4 : vector<8x128xf32>
    %12 = arith.addf %0, %11 : vector<8x128xf32>
    %13 = arith.mulf %9, %9 : vector<8x128xf32>
    %14 = arith.addf %0, %13 : vector<8x128xf32>
    %15 = arith.addf %0, %10 : vector<8x128xf32>
    %c0_6 = arith.constant 0 : index
    %c0_7 = arith.constant 0 : index
    %c0_8 = arith.constant 0 : index
    %c0_9 = arith.constant 0 : index
    %16 = vector.load %arg4[%c0_6, %c0_7, %c0_8, %c0_9] : memref<1x1x8x128xf32, #tpu.memory_space<vmem>>, vector<1x1x8x128xf32>
    %17 = vector.shape_cast %16 : vector<1x1x8x128xf32> to vector<8x128xf32>
    %18 = vector.shape_cast %12 : vector<8x128xf32> to vector<1x1x8x128xf32>
    tpu.vector_store %arg4[%c0_6, %c0_7, %c0_8, %c0_9], %18 {strides = array<i32>} : memref<1x1x8x128xf32, #tpu.memory_space<vmem>>, vector<1x1x8x128xf32>,
    %c0_10 = arith.constant 0 : index
    %c0_11 = arith.constant 0 : index
    %c0_12 = arith.constant 0 : index
    %c0_13 = arith.constant 0 : index
    %19 = vector.load %arg5[%c0_10, %c0_11, %c0_12, %c0_13] : memref<1x1x8x128xf32, #tpu.memory_space<vmem>>, vector<1x1x8x128xf32>
    %20 = vector.shape_cast %19 : vector<1x1x8x128xf32> to vector<8x128xf32>
    %21 = vector.shape_cast %14 : vector<8x128xf32> to vector<1x1x8x128xf32>
    tpu.vector_store %arg5[%c0_10, %c0_11, %c0_12, %c0_13], %21 {strides = array<i32>} : memref<1x1x8x128xf32, #tpu.memory_space<vmem>>, vector<1x1x8x128xf32>,
    %c0_14 = arith.constant 0 : index
    %c0_15 = arith.constant 0 : index
    %c0_16 = arith.constant 0 : index
    %c0_17 = arith.constant 0 : index
    %22 = vector.load %arg6[%c0_14, %c0_15, %c0_16, %c0_17] : memref<1x1x8x128xf32, #tpu.memory_space<vmem>>, vector<1x1x8x128xf32>
    %23 = vector.shape_cast %22 : vector<1x1x8x128xf32> to vector<8x128xf32>
    %24 = vector.shape_cast %15 : vector<8x128xf32> to vector<1x1x8x128xf32>
    tpu.vector_store %arg6[%c0_14, %c0_15, %c0_16, %c0_17], %24 {strides = array<i32>} : memref<1x1x8x128xf32, #tpu.memory_space<vmem>>, vector<1x1x8x128xf32>,
    return
  }
  func.func @transform_0(%arg0: i32, %arg1: i32) -> (i32, i32, i32) {
    %c0_i32 = arith.constant 0 : i32
    %c0_i32_0 = arith.constant 0 : i32
    return %arg0, %arg1, %c0_i32 : i32, i32, i32
  }
  func.func @transform_1(%arg0: i32, %arg1: i32) -> (i32, i32, i32) {
    %c0_i32 = arith.constant 0 : i32
    %c0_i32_0 = arith.constant 0 : i32
    return %arg0, %arg1, %c0_i32 : i32, i32, i32
  }
  func.func @transform_2(%arg0: i32, %arg1: i32) -> (i32, i32, i32, i32) {
    %c0_i32 = arith.constant 0 : i32
    %c0_i32_0 = arith.constant 0 : i32
    %c0_i32_1 = arith.constant 0 : i32
    return %arg0, %arg1, %c0_i32, %c0_i32_0 : i32, i32, i32, i32
  }
  func.func @transform_3(%arg0: i32, %arg1: i32) -> (i32, i32, i32, i32) {
    %c0_i32 = arith.constant 0 : i32
    %c0_i32_0 = arith.constant 0 : i32
    %c0_i32_1 = arith.constant 0 : i32
    return %arg0, %arg1, %c0_i32, %c0_i32_0 : i32, i32, i32, i32
  }
  func.func @transform_4(%arg0: i32, %arg1: i32) -> (i32, i32, i32, i32) {
    %c0_i32 = arith.constant 0 : i32
    %c0_i32_0 = arith.constant 0 : i32
    %c0_i32_1 = arith.constant 0 : i32
    return %arg0, %arg1, %c0_i32, %c0_i32_0 : i32, i32, i32, i32
  }
}

</mosaic_0001>

<llo_original>
// kernel: tpu_custom_call.1
$region0: #{tpu_custom_call.1}
  #allocation0 [shape = 'u32[]', space=smem, size = 0x4, offset = 0x4, fixed_abs, tag = 'smem constant byte address 0x4 - core index']
  #allocation1 [shape = 'u32[144,128]{1,0:T(1,128)}', space=vmem, size = 0x12000, scoped, tag = 'internal scratch']
  %s0 = inlined_call_operand.hbm [shape: f32[2,8,128], index: 0, kind: input, shape index: {}]
  %s1 = inlined_call_operand.hbm [shape: f32[2,8,128], index: 1, kind: input, shape index: {}]
  %s2 = inlined_call_operand.hbm [shape: f32[2,1,8,128], index: 2, kind: output, shape index: {0}]
  %s3 = inlined_call_operand.hbm [shape: f32[2,1,8,128], index: 3, kind: output, shape index: {1}]
  %s4 = inlined_call_operand.hbm [shape: f32[2,1,8,128], index: 4, kind: output, shape index: {2}]
  %5 = xla_tuple %s2, %s3, %s4
  %s6 = sld [smem:[#allocation0]]
  $region65: #{tpu_custom_call.1} parent=0
    _
  %s8 = ssub.s32 1, %s6
  %s9 = scalar_select 0, %s8, %s6
  $region1: #{tpu_custom_call.1} parent=0
    #allocation2 [shape = 'u8[8192]{0}', space=vmem, size = 0x2000, scoped, tag = 'input window, operand 0']
    #allocation3 [shape = 's32[2]{0}', space=sflag, size = 0x8, scoped, tag = 'scoped memory for tpu_custom_call.1']
    #allocation4 [shape = 's32[2]{0}', space=sflag, size = 0x8, scoped, tag = 'scoped memory for tpu_custom_call.1']
    #allocation5 [shape = 'u8[8192]{0}', space=vmem, size = 0x2000, scoped, tag = 'input window, operand 1']
    #allocation6 [shape = 's32[2]{0}', space=sflag, size = 0x8, scoped, tag = 'scoped memory for tpu_custom_call.1']
    #allocation7 [shape = 'u8[8192]{0}', space=vmem, size = 0x2000, scoped, tag = 'output window, operand 0']
    #allocation8 [shape = 'u8[8192]{0}', space=vmem, size = 0x2000, scoped, tag = 'output window, operand 1']
    #allocation9 [shape = 's32[2]{0}', space=sflag, size = 0x8, scoped, tag = 'scoped memory for tpu_custom_call.1']
    #allocation10 [shape = 'u8[8192]{0}', space=vmem, size = 0x2000, scoped, tag = 'output window, operand 2']
    %10 = vsyncpa [#allocation3], 0
    %s11 = scalar_lea.sflag [#allocation3], 1
    %12 = vsyncpa %s11, 0
    %13 = vsyncpa [#allocation6], 0
    %s14 = scalar_lea.sflag [#allocation6], 1
    %15 = vsyncpa %s14, 0
    %16 = vsyncpa [#allocation4], 0
    %s17 = scalar_lea.sflag [#allocation4], 1
    %18 = vsyncpa %s17, 0
    %19 = vsyncpa [#allocation9], 0
    %s20 = scalar_lea.sflag [#allocation9], 1
    %21 = vsyncpa %s20, 0
    loop: start=0, step=1, limit=4
    $region2: #{tpu_custom_call.1} parent=1 // loop_pre_header
      _
    $region3: #{tpu_custom_call.1} parent=1 // loop_header
      %s23 = sphi 0, %s27
      %p24 = scmp.ge.s32.totalorder %s23, 4
      %s30 = sphi 0, %s42
      %s31 = sphi 0, %s38
      %s32 = sphi 0, %s30
      %s33 = sphi 0, %s31
      %s34 = sphi 0, %s32
      %s35 = sphi 0, %s33
      %s47 = sphi 0, %s49
      %s50 = sphi 0, %s47
      %s51 = sphi 0, %s50
      %s67 = sphi 0, %s51
      %s75 = sphi 0, %s77
      %s78 = sphi 0, %s75
      %s79 = sphi 0, %s78
      %s95 = sphi 0, %s79
      %s103 = sphi 0, %s105
      %s106 = sphi 0, %s103
      %s107 = sphi 0, %s106
      %s123 = sphi 0, %s107
      %s131 = sphi 0, %s133
      %s134 = sphi 0, %s131
      %s135 = sphi 0, %s134
      %s151 = sphi 0, %s135
      %s159 = sphi 0, %s161
      %s162 = sphi 0, %s159
      %s163 = sphi 0, %s162
      %s179 = sphi 0, %s163
    $region4: #{tpu_custom_call.1} parent=1 // loop_header_branch
      %26 = sbr.rel (%p24) target = $region8
    $region5: #{tpu_custom_call.1} parent=1 // loop_body
      %s28 = ssub.s32 %s23, 1
      %s29 = ssub.s32 %s23, 2
      %s36 = sadd.s32 1, %s31
      %p37 = scmp.ge.s32.totalorder %s36, 1
      %s38 = scalar_select %p37, 0, %s36
      %s39 = sadd.s32 1, %s30
      %s40 = scalar_select %p37, %s39, %s30
      %p41 = scmp.ge.s32.totalorder %s40, 2
      %s42 = scalar_select %p41, 0, %s40
      %s43 = ssub.s32 %s30, %s42
      %s44 = ssub.s32 %s31, %s38
      %s45 = sor.u32 %s43, %s44
      %p46 = scmp.eq.s32.totalorder %s45, 0
      %s48 = sadd.s32 %s47, 1
      %s49 = scalar_select %p46, %s47, %s48
      %p52 = pneg %p46
      %p53 = scmp.eq.s32.totalorder %s23, 1
      %p54 = por %p52, %p53
      %p55 = scmp.ne.s32.totalorder %s47, %s50
      %p56 = scmp.eq.s32.totalorder %s23, 0
      %p57 = por %p55, %p56
      %p58 = scmp.ne.s32.totalorder %s47, %s50
      %p59 = scmp.eq.s32.totalorder %s28, 1
      %p60 = por %p58, %p59
      %p61 = scmp.ne.s32.totalorder %s50, %s51
      %p62 = scmp.eq.s32.totalorder %s28, 0
      %p63 = por %p61, %p62
      %p64 = scmp.ne.s32.totalorder %s50, %s51
      %p65 = scmp.eq.s32.totalorder %s29, 1
      %p66 = por %p64, %p65
      %p68 = scmp.ne.s32.totalorder %s51, %s67
      %p69 = scmp.eq.s32.totalorder %s29, 0
      %p70 = por %p68, %p69
      %s71 = ssub.s32 %s30, %s42
      %s72 = ssub.s32 %s31, %s38
      %s73 = sor.u32 %s71, %s72
      %p74 = scmp.eq.s32.totalorder %s73, 0
      %s76 = sadd.s32 %s75, 1
      %s77 = scalar_select %p74, %s75, %s76
      %p80 = pneg %p74
      %p81 = scmp.eq.s32.totalorder %s23, 1
      %p82 = por %p80, %p81
      %p83 = scmp.ne.s32.totalorder %s75, %s78
      %p84 = scmp.eq.s32.totalorder %s23, 0
      %p85 = por %p83, %p84
      %p86 = scmp.ne.s32.totalorder %s75, %s78
      %p87 = scmp.eq.s32.totalorder %s28, 1
      %p88 = por %p86, %p87
      %p89 = scmp.ne.s32.totalorder %s78, %s79
      %p90 = scmp.eq.s32.totalorder %s28, 0
      %p91 = por %p89, %p90
      %p92 = scmp.ne.s32.totalorder %s78, %s79
      %p93 = scmp.eq.s32.totalorder %s29, 1
      %p94 = por %p92, %p93
      %p96 = scmp.ne.s32.totalorder %s79, %s95
      %p97 = scmp.eq.s32.totalorder %s29, 0
      %p98 = por %p96, %p97
      %s99 = ssub.s32 %s30, %s42
      %s100 = ssub.s32 %s31, %s38
      %s101 = sor.u32 %s99, %s100
      %p102 = scmp.eq.s32.totalorder %s101, 0
      %s104 = sadd.s32 %s103, 1
      %s105 = scalar_select %p102, %s103, %s104
      %p108 = pneg %p102
      %p109 = scmp.eq.s32.totalorder %s23, 1
      %p110 = por %p108, %p109
      %p111 = scmp.ne.s32.totalorder %s103, %s106
      %p112 = scmp.eq.s32.totalorder %s23, 0
      %p113 = por %p111, %p112
      %p114 = scmp.ne.s32.totalorder %s103, %s106
      %p115 = scmp.eq.s32.totalorder %s28, 1
      %p116 = por %p114, %p115
      %p117 = scmp.ne.s32.totalorder %s106, %s107
      %p118 = scmp.eq.s32.totalorder %s28, 0
      %p119 = por %p117, %p118
      %p120 = scmp.ne.s32.totalorder %s106, %s107
      %p121 = scmp.eq.s32.totalorder %s29, 1
      %p122 = por %p120, %p121
      %p124 = scmp.ne.s32.totalorder %s107, %s123
      %p125 = scmp.eq.s32.totalorder %s29, 0
      %p126 = por %p124, %p125
      %s127 = ssub.s32 %s30, %s42
      %s128 = ssub.s32 %s31, %s38
      %s129 = sor.u32 %s127, %s128
      %p130 = scmp.eq.s32.totalorder %s129, 0
      %s132 = sadd.s32 %s131, 1
      %s133 = scalar_select %p130, %s131, %s132
      %p136 = pneg %p130
      %p137 = scmp.eq.s32.totalorder %s23, 1
      %p138 = por %p136, %p137
      %p139 = scmp.ne.s32.totalorder %s131, %s134
      %p140 = scmp.eq.s32.totalorder %s23, 0
      %p141 = por %p139, %p140
      %p142 = scmp.ne.s32.totalorder %s131, %s134
      %p143 = scmp.eq.s32.totalorder %s28, 1
      %p144 = por %p142, %p143
      %p145 = scmp.ne.s32.totalorder %s134, %s135
      %p146 = scmp.eq.s32.totalorder %s28, 0
      %p147 = por %p145, %p146
      %p148 = scmp.ne.s32.totalorder %s134, %s135
      %p149 = scmp.eq.s32.totalorder %s29, 1
      %p150 = por %p148, %p149
      %p152 = scmp.ne.s32.totalorder %s135, %s151
      %p153 = scmp.eq.s32.totalorder %s29, 0
      %p154 = por %p152, %p153
      %s155 = ssub.s32 %s30, %s42
      %s156 = ssub.s32 %s31, %s38
      %s157 = sor.u32 %s155, %s156
      %p158 = scmp.eq.s32.totalorder %s157, 0
      %s160 = sadd.s32 %s159, 1
      %s161 = scalar_select %p158, %s159, %s160
      %p164 = pneg %p158
      %p165 = scmp.eq.s32.totalorder %s23, 1
      %p166 = por %p164, %p165
      %p167 = scmp.ne.s32.totalorder %s159, %s162
      %p168 = scmp.eq.s32.totalorder %s23, 0
      %p169 = por %p167, %p168
      %p170 = scmp.ne.s32.totalorder %s159, %s162
      %p171 = scmp.eq.s32.totalorder %s28, 1
      %p172 = por %p170, %p171
      %p173 = scmp.ne.s32.totalorder %s162, %s163
      %p174 = scmp.eq.s32.totalorder %s28, 0
      %p175 = por %p173, %p174
      %p176 = scmp.ne.s32.totalorder %s162, %s163
      %p177 = scmp.eq.s32.totalorder %s29, 1
      %p178 = por %p176, %p177
      %p180 = scmp.ne.s32.totalorder %s163, %s179
      %p181 = scmp.eq.s32.totalorder %s29, 0
      %p182 = por %p180, %p181
      %p183 = scmp.le.s32.totalorder 1, %s23
      %p184 = scmp.lt.s32.totalorder %s23, 3
      %p185 = pnand %p183, %p184
      %p186 = pneg %p185
      // Predicated region
      $region9: #{tpu_custom_call.1} parent=5 // pred_check
        _
      $region10: #{tpu_custom_call.1} parent=5 // pred_check_branch
        %188 = sbr.rel (%p185) target = $region12
      $region11: #{tpu_custom_call.1} parent=5 // pred_region
        %s189 = ssub.s32 %s23, 1
      $region12: #{tpu_custom_call.1} parent=5 // pred_fallthru
        _
      %p190 = scmp.lt.s32.totalorder %s23, 2
      // Predicated region
      $region13: #{tpu_custom_call.1} parent=5 // pred_check
        %p191 = pneg %p190
      $region14: #{tpu_custom_call.1} parent=5 // pred_check_branch
        %193 = sbr.rel (%p191) target = $region16
      $region15: #{tpu_custom_call.1} parent=5 // pred_region
        // Predicated region
        $region17: #{tpu_custom_call.1} parent=15 // pred_check
          %p194 = pneg %p57
        $region18: #{tpu_custom_call.1} parent=15 // pred_check_branch
          %196 = sbr.rel (%p194) target = $region20
        $region19: #{tpu_custom_call.1} parent=15 // pred_region
          %s197 = sand.u32 %s47, 1
          %s198 = scalar_lea.sflag [#allocation3], %s197
          %s199 = sand.u32 %s47, 1
          %s200 = smul.addr %s199, 8
          %s201 = scalar_lea.vmem [#allocation2], %s200
          %s203 = ssub.s32 128, 128
          %204 = vsyncadd %s198, %s203
          %s205 = sadd.s32 %s31, %s30
          %s206 = smul.addr %s205, 128
          %s207 = scalar_lea.hbm %s0, %s206
          %s209 = sshll.u32 %s201, 4
          %s210 = int_to_ptr.vmem [resolvable:$true] %s209
          %212 = dma.hbm_to_vmem [thread:$0]  %s207, 128, %s210, %s198
        $region20: #{tpu_custom_call.1} parent=15 // pred_fallthru
          _
        // Predicated region
        $region21: #{tpu_custom_call.1} parent=15 // pred_check
          %p213 = pneg %p85
        $region22: #{tpu_custom_call.1} parent=15 // pred_check_branch
          %215 = sbr.rel (%p213) target = $region24
        $region23: #{tpu_custom_call.1} parent=15 // pred_region
          %s216 = sand.u32 %s75, 1
          %s217 = scalar_lea.sflag [#allocation6], %s216
          %s218 = sand.u32 %s75, 1
          %s219 = smul.addr %s218, 8
          %s220 = scalar_lea.vmem [#allocation5], %s219
          %s222 = ssub.s32 128, 128
          %223 = vsyncadd %s217, %s222
          %s224 = sadd.s32 %s31, %s30
          %s225 = smul.addr %s224, 128
          %s226 = scalar_lea.hbm %s1, %s225
          %s228 = sshll.u32 %s220, 4
          %s229 = int_to_ptr.vmem [resolvable:$true] %s228
          %231 = dma.hbm_to_vmem [thread:$0]  %s226, 128, %s229, %s217
        $region24: #{tpu_custom_call.1} parent=15 // pred_fallthru
          _
      $region16: #{tpu_custom_call.1} parent=5 // pred_fallthru
        _
      %p232 = scmp.le.s32.totalorder 1, %s23
      %p233 = scmp.lt.s32.totalorder %s23, 3
      %p234 = pnand %p232, %p233
      %p235 = pneg %p234
      // Predicated region
      $region25: #{tpu_custom_call.1} parent=5 // pred_check
        _
      $region26: #{tpu_custom_call.1} parent=5 // pred_check_branch
        %237 = sbr.rel (%p234) target = $region28
      $region27: #{tpu_custom_call.1} parent=5 // pred_region
        %s238 = ssub.s32 %s23, 1
        %s239 = sand.u32 %s50, 1
        %s240 = scalar_lea.sflag [#allocation3], %s239
        %s241 = sand.u32 %s50, 1
        %s242 = smul.addr %s241, 8
        %s243 = scalar_lea.vmem [#allocation2], %s242
        // Predicated region
        $region29: #{tpu_custom_call.1} parent=27 // pred_check
          %p244 = pneg %p63
        $region30: #{tpu_custom_call.1} parent=27 // pred_check_branch
          %246 = sbr.rel (%p244) target = $region32
        $region31: #{tpu_custom_call.1} parent=27 // pred_region
          %247 = dma.done %s240, 128
        $region32: #{tpu_custom_call.1} parent=27 // pred_fallthru
          _
        %s248 = sand.u32 %s78, 1
        %s249 = scalar_lea.sflag [#allocation6], %s248
        %s250 = sand.u32 %s78, 1
        %s251 = smul.addr %s250, 8
        %s252 = scalar_lea.vmem [#allocation5], %s251
        // Predicated region
        $region33: #{tpu_custom_call.1} parent=27 // pred_check
          %p253 = pneg %p91
        $region34: #{tpu_custom_call.1} parent=27 // pred_check_branch
          %255 = sbr.rel (%p253) target = $region36
        $region35: #{tpu_custom_call.1} parent=27 // pred_region
          %256 = dma.done %s249, 128
        $region36: #{tpu_custom_call.1} parent=27 // pred_fallthru
          _
        %s257 = sand.u32 %s50, 1
        %s258 = scalar_lea.sflag [#allocation3], %s257
        %s259 = sand.u32 %s50, 1
        %s260 = smul.addr %s259, 8
        %s261 = scalar_lea.vmem [#allocation2], %s260
        %p262 = pneg %p63
        %p263 = pneg %p60
        %s264 = sand.u32 %s78, 1
        %s265 = scalar_lea.sflag [#allocation6], %s264
        %s266 = sand.u32 %s78, 1
        %s267 = smul.addr %s266, 8
        %s268 = scalar_lea.vmem [#allocation5], %s267
        %p269 = pneg %p91
        %p270 = pneg %p88
        %p271 = pneg %p119
        %p272 = pneg %p116
        %s273 = sand.u32 %s106, 1
        %s274 = scalar_lea.sflag [#allocation4], %s273
        %s275 = sand.u32 %s106, 1
        %s276 = smul.addr %s275, 8
        %s277 = scalar_lea.vmem [#allocation7], %s276
        %p278 = pneg %p147
        %p279 = pneg %p144
        %s280 = sand.u32 %s28, 1
        %s281 = scalar_lea.sflag [#allocation9], %s280
        %s282 = sand.u32 %s134, 1
        %s283 = smul.addr %s282, 8
        %s284 = scalar_lea.vmem [#allocation8], %s283
        %p285 = pneg %p175
        %p286 = pneg %p172
        %s287 = sand.u32 %s28, 1
        %s288 = scalar_lea.sflag [#allocation9], %s287
        %s289 = sand.u32 %s162, 1
        %s290 = smul.addr %s289, 8
        %s291 = scalar_lea.vmem [#allocation10], %s290
        %v292 = vld [vmem:[%s243] sm:$0xff]
        %v293 = vld [vmem:[%s252] sm:$0xff]
        %v294 = vxor.u32 %v292, 2147483648
        %v295 = vmul.f32 %v294, 1.442695
        %v296 = vpow.pop %v295
        %v297 = vadd.f32 %v296, 1.0
        %v298 = vrcp.pop %v297
        %v299 = vmul.f32 1.0, %v298
        %v300 = vmul.f32 %v293, %v293
        %v301 = vmul.f32 %v299, %v293
        %v302 = vadd.f32 %v301, 0.0
        %v303 = vmul.f32 %v299, %v299
        %v304 = vadd.f32 %v303, 0.0
        %v305 = vadd.f32 %v300, 0.0
        %306 = vst [vmem:[%s277] sm:$0xff] %v302
        %307 = vst [vmem:[%s284] sm:$0xff] %v304
        %308 = vst [vmem:[%s291] sm:$0xff] %v305
        %s309 = sand.u32 %s106, 1
        %s310 = scalar_lea.sflag [#allocation4], %s309
        %s311 = sand.u32 %s106, 1
        %s312 = smul.addr %s311, 8
        %s313 = scalar_lea.vmem [#allocation7], %s312
        %s314 = sand.u32 %s28, 1
        %s315 = scalar_lea.sflag [#allocation9], %s314
        %s316 = sand.u32 %s134, 1
        %s317 = smul.addr %s316, 8
        %s318 = scalar_lea.vmem [#allocation8], %s317
        %s319 = sand.u32 %s28, 1
        %s320 = scalar_lea.sflag [#allocation9], %s319
        %s321 = sand.u32 %s162, 1
        %s322 = smul.addr %s321, 8
        %s323 = scalar_lea.vmem [#allocation10], %s322
        // Predicated region
        $region37: #{tpu_custom_call.1} parent=27 // pred_check
          %p324 = pneg %p116
        $region38: #{tpu_custom_call.1} parent=27 // pred_check_branch
          %326 = sbr.rel (%p324) target = $region40
        $region39: #{tpu_custom_call.1} parent=27 // pred_region
          %s328 = ssub.s32 128, 128
          %329 = vsyncadd %s310, %s328
          %s330 = sadd.s32 %s33, %s32
          %s331 = smul.addr %s330, 128
          %s332 = scalar_lea.hbm %s2, %s331
          %s334 = sshll.u32 %s313, 4
          %s335 = int_to_ptr.vmem [resolvable:$true] %s334
          %337 = dma.vmem_to_hbm [thread:$0]  %s335, 128, %s332, %s310
        $region40: #{tpu_custom_call.1} parent=27 // pred_fallthru
          _
        // Predicated region
        $region41: #{tpu_custom_call.1} parent=27 // pred_check
          %p338 = pneg %p144
        $region42: #{tpu_custom_call.1} parent=27 // pred_check_branch
          %340 = sbr.rel (%p338) target = $region44
        $region43: #{tpu_custom_call.1} parent=27 // pred_region
          %s342 = ssub.s32 128, 128
          %343 = vsyncadd %s315, %s342
          %s344 = sadd.s32 %s33, %s32
          %s345 = smul.addr %s344, 128
          %s346 = scalar_lea.hbm %s3, %s345
          %s348 = sshll.u32 %s318, 4
          %s349 = int_to_ptr.vmem [resolvable:$true] %s348
          %351 = dma.vmem_to_hbm [thread:$0]  %s349, 128, %s346, %s315
        $region44: #{tpu_custom_call.1} parent=27 // pred_fallthru
          _
        // Predicated region
        $region45: #{tpu_custom_call.1} parent=27 // pred_check
          %p352 = pneg %p172
        $region46: #{tpu_custom_call.1} parent=27 // pred_check_branch
          %354 = sbr.rel (%p352) target = $region48
        $region47: #{tpu_custom_call.1} parent=27 // pred_region
          %s356 = ssub.s32 128, 128
          %357 = vsyncadd %s320, %s356
          %s358 = sadd.s32 %s33, %s32
          %s359 = smul.addr %s358, 128
          %s360 = scalar_lea.hbm %s4, %s359
          %s362 = sshll.u32 %s323, 4
          %s363 = int_to_ptr.vmem [resolvable:$true] %s362
          %365 = dma.vmem_to_hbm [thread:$0]  %s363, 128, %s360, %s320
        $region48: #{tpu_custom_call.1} parent=27 // pred_fallthru
          _
      $region28: #{tpu_custom_call.1} parent=5 // pred_fallthru
        _
      %p366 = scmp.le.s32.totalorder 2, %s23
      // Predicated region
      $region49: #{tpu_custom_call.1} parent=5 // pred_check
        %p367 = pneg %p366
      $region50: #{tpu_custom_call.1} parent=5 // pred_check_branch
        %369 = sbr.rel (%p367) target = $region52
      $region51: #{tpu_custom_call.1} parent=5 // pred_region
        %s370 = ssub.s32 %s23, 2
        // Predicated region
        $region53: #{tpu_custom_call.1} parent=51 // pred_check
          %p371 = pneg %p122
        $region54: #{tpu_custom_call.1} parent=51 // pred_check_branch
          %373 = sbr.rel (%p371) target = $region56
        $region55: #{tpu_custom_call.1} parent=51 // pred_region
          %s374 = sand.u32 %s107, 1
          %s375 = scalar_lea.sflag [#allocation4], %s374
          %s376 = sand.u32 %s107, 1
          %s377 = smul.addr %s376, 8
          %s378 = scalar_lea.vmem [#allocation7], %s377
          %379 = dma.done %s375, 128
        $region56: #{tpu_custom_call.1} parent=51 // pred_fallthru
          _
        // Predicated region
        $region57: #{tpu_custom_call.1} parent=51 // pred_check
          %p380 = pneg %p150
        $region58: #{tpu_custom_call.1} parent=51 // pred_check_branch
          %382 = sbr.rel (%p380) target = $region60
        $region59: #{tpu_custom_call.1} parent=51 // pred_region
          %s383 = sand.u32 %s29, 1
          %s384 = scalar_lea.sflag [#allocation9], %s383
          %s385 = sand.u32 %s135, 1
          %s386 = smul.addr %s385, 8
          %s387 = scalar_lea.vmem [#allocation8], %s386
          %388 = dma.done %s384, 128
        $region60: #{tpu_custom_call.1} parent=51 // pred_fallthru
          _
        // Predicated region
        $region61: #{tpu_custom_call.1} parent=51 // pred_check
          %p389 = pneg %p178
        $region62: #{tpu_custom_call.1} parent=51 // pred_check_branch
          %391 = sbr.rel (%p389) target = $region64
        $region63: #{tpu_custom_call.1} parent=51 // pred_region
          %s392 = sand.u32 %s29, 1
          %s393 = scalar_lea.sflag [#allocation9], %s392
          %s394 = sand.u32 %s163, 1
          %s395 = smul.addr %s394, 8
          %s396 = scalar_lea.vmem [#allocation10], %s395
          %397 = dma.done %s393, 128
        $region64: #{tpu_custom_call.1} parent=51 // pred_fallthru
          _
      $region52: #{tpu_custom_call.1} parent=5 // pred_fallthru
        _
    $region6: #{tpu_custom_call.1} parent=1 // loop_footer
      %s27 = sadd.s32 1, %s23
    $region7: #{tpu_custom_call.1} parent=1 // loop_footer_branch
      %22 = sbr.rel target = $region3
    $region8: #{tpu_custom_call.1} parent=1 // loop_exit
      _
    %398 = vsyncpa [#allocation3], 1
    %s399 = scalar_lea.sflag [#allocation3], 1
    %400 = vsyncpa %s399, 1
    %401 = vsyncpa [#allocation6], 1
    %s402 = scalar_lea.sflag [#allocation6], 1
    %403 = vsyncpa %s402, 1
    %404 = vsyncpa [#allocation4], 1
    %s405 = scalar_lea.sflag [#allocation4], 1
    %406 = vsyncpa %s405, 1
    %407 = vsyncpa [#allocation9], 1
    %s408 = scalar_lea.sflag [#allocation9], 1
    %409 = vsyncpa %s408, 1

</llo_original>
